<compile_context>
chip_gen: v7x
topology: tpu7x:2x2x1
jax: 0.10.0
libtpu: 0.0.40
codegen_flags: <defaults>
</compile_context>

<pallas_src>
import functools

import jax
import jax.numpy as jnp
from jax.experimental import pallas as pl
from jax.experimental.pallas import tpu as pltpu


# ------------------------------ Pallas kernel -------------------------------

def _vae_kernel(x_ref, w1_ref, b1_ref, w2_ref, b2_ref, wb_ref, bb_ref,
                wd1_ref, bd1_ref, wd2_ref, bd2_ref, mask_ref, o_ref, *, offs):
    """Fused VAE forward on one image block (C, H*W), channels-first layout."""
    m = x_ref.shape[-1]                       # flattened spatial extent (lanes)

    def mm(w_ref, a, b_ref):                  # (Co,K) @ (K,M) + (Co,1)
        return jnp.dot(w_ref[...], a, preferred_element_type=jnp.float32) + b_ref[...]

    def silu(h):
        return h * jax.nn.sigmoid(h)

    def taps(a, backward):
        # Stack spatially shifted copies of `a` along the contraction axis so
        # the kxk conv becomes a single K = k*k*C matmul. pltpu.roll == np.roll.
        parts = []
        for off in offs:
            if off == 0:
                parts.append(a)
            else:
                shift = off if backward else (m - off)   # read a[p - off] / a[p + off]
                parts.append(pltpu.roll(a, shift=shift, axis=1))
        return jnp.concatenate(parts, axis=0)

    x = x_ref[...]
    # Encoder: conv1 (1x1) -> SiLU      (BN1 folded into enc conv2 weights)
    a1 = silu(mm(w1_ref, x, b1_ref))
    # Encoder: conv2 (kxk valid, on the full grid) -> SiLU   (BN2 folded into binarizer)
    a2 = silu(mm(w2_ref, taps(a1, backward=False), b2_ref))
    # Binarizer: conv (1x1, BN2 folded in) -> sign   (sign(tanh(x)) == sign(x))
    pre = mm(wb_ref, a2, bb_ref)
    code = (pre > 0.).astype(jnp.float32) - (pre < 0.).astype(jnp.float32)
    code = code * mask_ref[...]               # zero invalid grid positions == zero padding
    # Decoder: ConvTranspose (kxk) + BN -> SiLU   (wraparound reads hit masked zeros)
    a4 = silu(mm(wd1_ref, taps(code, backward=True), bd1_ref))
    # Decoder: conv2 (1x1) + BN -> SiLU
    o_ref[...] = silu(mm(wd2_ref, a4, bd2_ref))


# --------------------------------- wrapper ----------------------------------

def bn_eval_affine(gamma, beta, rmean, rvar, eps=1e-5):
    scale = gamma / jnp.sqrt(rvar + eps)
    return scale, beta - rmean * scale


def vae_forward(x_nchw, p):
    f32 = jnp.float32
    N, C, H, W = x_nchw.shape
    k = p['e_w2_t'].shape[-1]
    HW = H * W

    # channels-first, spatially flattened: (C, N*H*W); lane dim = H*W per image
    x_cm = jnp.transpose(x_nchw, (1, 0, 2, 3)).reshape(C, N * HW).astype(f32)

    s1, t1 = bn_eval_affine(*p['e_bn1'])      # after enc SiLU1 -> fold into enc conv2 (input side)
    s2, t2 = bn_eval_affine(*p['e_bn2'])      # after enc SiLU2 -> fold into binarizer (input side)
    sd1, td1 = bn_eval_affine(*p['d_bn1'])    # right after dec convT -> fold into it (output side)
    sd2, td2 = bn_eval_affine(*p['d_bn2'])    # right after dec conv2 -> fold into it (output side)

    # Encoder conv1 (1x1): weight (Co, Ci, 1, 1)
    w1 = p['e_w1_t'][:, :, 0, 0].astype(f32)
    b1 = p['e_b1'].astype(f32).reshape(C, 1)

    # Encoder conv2 (kxk): tap weights stacked along K, BN1 folded into input side
    w2_taps = [p['e_w2_t'][:, :, dy, dx].astype(f32)
               for dy in range(k) for dx in range(k)]                     # (Co, Ci) per tap
    w2s = jnp.concatenate([wt * s1[None, :] for wt in w2_taps], axis=1)   # (Co, k*k*Ci)
    b2 = (p['e_b2'].astype(f32) + sum(wt @ t1 for wt in w2_taps)).reshape(C, 1)

    # Binarizer conv (1x1, bias=False), BN2 folded into input side
    wb = p['b_w_t'][:, :, 0, 0].astype(f32)
    wbs = wb * s2[None, :]
    bb = (wb @ t2).reshape(C, 1)

    # Decoder ConvTranspose (kxk): weight (Ci, Co, k, k); dec BN1 folded on output side
    wd1_taps = [p['d_w1_t'][:, :, dy, dx].astype(f32).T
                for dy in range(k) for dx in range(k)]                    # (Co, Ci) per tap
    wd1s = jnp.concatenate([sd1[:, None] * wt for wt in wd1_taps], axis=1)
    bd1 = (sd1 * p['d_b1'].astype(f32) + td1).reshape(C, 1)

    # Decoder conv2 (1x1), dec BN2 folded on output side
    wd2s = sd2[:, None] * p['d_w2_t'][:, :, 0, 0].astype(f32)
    bd2 = (sd2 * p['d_b2'].astype(f32) + td2).reshape(C, 1)

    # Validity mask of the kxk valid-conv output on the full HxW grid
    valid = (jnp.arange(H) <= H - k)[:, None] & (jnp.arange(W) <= W - k)[None, :]
    mask = valid.astype(f32).reshape(1, HW)

    offs = tuple(dy * W + dx for dy in range(k) for dx in range(k))
    kernel = functools.partial(_vae_kernel, offs=offs)
    const = lambda n: (0, 0)

    out_cm = pl.pallas_call(
        kernel,
        out_shape=jax.ShapeDtypeStruct((C, N * HW), f32),
        grid=(N,),
        in_specs=[
            pl.BlockSpec((C, HW), lambda n: (0, n)),        # activations, per image
            pl.BlockSpec(w1.shape, const),
            pl.BlockSpec(b1.shape, const),
            pl.BlockSpec(w2s.shape, const),
            pl.BlockSpec(b2.shape, const),
            pl.BlockSpec(wbs.shape, const),
            pl.BlockSpec(bb.shape, const),
            pl.BlockSpec(wd1s.shape, const),
            pl.BlockSpec(bd1.shape, const),
            pl.BlockSpec(wd2s.shape, const),
            pl.BlockSpec(bd2.shape, const),
            pl.BlockSpec(mask.shape, const),
        ],
        out_specs=pl.BlockSpec((C, HW), lambda n: (0, n)),
        compiler_params=pltpu.CompilerParams(
            dimension_semantics=("parallel",)),
    )(x_cm, w1, b1, w2s, b2, wbs, bb, wd1s, bd1, wd2s, bd2, mask)

    out = out_cm.reshape(C, N, H, W).transpose(1, 0, 2, 3)   # back to NCHW
    # F.interpolate(out, size=(H, W), bilinear, align_corners=True): identity here.
    return out


# ----------------------- params & pure-JAX reference ------------------------

def init_params(key, dim, k=2):
    keys = jax.random.split(key, 16)
    it = iter(keys)
    nrm = lambda kk, shape, s=0.1: jax.random.normal(kk, shape, jnp.float32) * s

    def bn(kk):
        k1, k2, k3, k4 = jax.random.split(kk, 4)
        return (1.0 + nrm(k1, (dim,)), nrm(k2, (dim,)),
                nrm(k3, (dim,)), 0.5 + jnp.abs(nrm(k4, (dim,))))

    p = {}
    p['e_w1_t'] = nrm(next(it), (dim, dim, 1, 1)); p['e_b1'] = nrm(next(it), (dim,))
    p['e_bn1'] = bn(next(it))
    p['e_w2_t'] = nrm(next(it), (dim, dim, k, k)); p['e_b2'] = nrm(next(it), (dim,))
    p['e_bn2'] = bn(next(it))
    p['b_w_t'] = nrm(next(it), (dim, dim, 1, 1))                     # Binarizer, bias=False
    p['d_w1_t'] = nrm(next(it), (dim, dim, k, k)); p['d_b1'] = nrm(next(it), (dim,))
    p['d_bn1'] = bn(next(it))
    p['d_w2_t'] = nrm(next(it), (dim, dim, 1, 1)); p['d_b2'] = nrm(next(it), (dim,))
    p['d_bn2'] = bn(next(it))
    return p


def vae_reference(x_nchw, p):
    """Pure-JAX re-implementation of the PyTorch module (eval mode)."""
    f32 = jnp.float32
    hi = jax.lax.Precision.HIGHEST

    def conv(x, w, b=None):
        y = jax.lax.conv_general_dilated(
            x.astype(f32), w.astype(f32), window_strides=(1, 1), padding='VALID',
            dimension_numbers=('NCHW', 'OIHW', 'NCHW'), precision=hi)
        return y if b is None else y + b.astype(f32).reshape(1, -1, 1, 1)

    def bn(x, bn_p, eps=1e-5):
        g, b, rm, rv = [a.astype(f32).reshape(1, -1, 1, 1) for a in bn_p]
        return (x - rm) / jnp.sqrt(rv + eps) * g + b

    silu = lambda h: h * jax.nn.sigmoid(h)

    h = bn(silu(conv(x_nchw, p['e_w1_t'], p['e_b1'])), p['e_bn1'])
    h = bn(silu(conv(h, p['e_w2_t'], p['e_b2'])), p['e_bn2'])
    pre = conv(h, p['b_w_t'])
    code = jnp.sign(jnp.tanh(pre))
    k = p['d_w1_t'].shape[-1]
    codep = jnp.pad(code, ((0, 0), (0, 0), (k - 1, k - 1), (k - 1, k - 1)))
    wt = jnp.transpose(p['d_w1_t'][:, :, ::-1, ::-1], (1, 0, 2, 3))   # convT as flipped conv
    d = silu(bn(conv(codep, wt, p['d_b1'])), p['d_bn1']) if False else \
        silu(bn(conv(codep, wt, p['d_b1']), p['d_bn1']))
    d = silu(bn(conv(d, p['d_w2_t'], p['d_b2']), p['d_bn2']))
    return d, pre


# ----------------------------------- main ------------------------------------

if __name__ == "__main__":
    key = jax.random.PRNGKey(0)
    kx, kp = jax.random.split(key)
    N, dim, H, W = 2, 8, 16, 16                    # VAE(dim=8, k=2, s=1, p=0), eval mode
    x = jax.random.normal(kx, (N, dim, H, W), jnp.float32)
    params = init_params(kp, dim, k=2)

    fwd = jax.jit(vae_forward)
    out = jax.block_until_ready(fwd(x, params))
    assert out.shape == (N, dim, H, W), out.shape
    assert bool(jnp.all(jnp.isfinite(out)))

    # Correctness check against the pure-JAX reference. Output positions fed by a
    # binarizer pre-activation that is ~0 are excluded: sign() is discontinuous
    # there and fp rounding may legitimately flip the bit.
    ref, pre = vae_reference(x, params)
    risky = jnp.any(jnp.abs(pre) < 1e-3, axis=1)                        # (N, Ho, Wo)
    affected = jnp.zeros((N, H, W), bool)
    for pd in (((0, 0), (0, 1), (0, 1)), ((0, 0), (1, 0), (0, 1)),
               ((0, 0), (0, 1), (1, 0)), ((0, 0), (1, 0), (1, 0))):
        affected = affected | jnp.pad(risky, pd)
    err = jnp.where(affected[:, None, :, :], 0.0, jnp.abs(out - ref))
    max_err = float(jnp.max(err))
    assert max_err < 1e-3, max_err

    print("KERNEL_OK")
</pallas_src>

<mosaic_0001>
module attributes {stable_mosaic.version = 11 : i64} {
  func.func @_vae_kernel(%arg0: i32, %arg1: memref<8x256xf32, #tpu.memory_space<vmem>>, %arg2: memref<8x8xf32, #tpu.memory_space<vmem>>, %arg3: memref<8x1xf32, #tpu.memory_space<vmem>>, %arg4: memref<8x32xf32, #tpu.memory_space<vmem>>, %arg5: memref<8x1xf32, #tpu.memory_space<vmem>>, %arg6: memref<8x8xf32, #tpu.memory_space<vmem>>, %arg7: memref<8x1xf32, #tpu.memory_space<vmem>>, %arg8: memref<8x32xf32, #tpu.memory_space<vmem>>, %arg9: memref<8x1xf32, #tpu.memory_space<vmem>>, %arg10: memref<8x8xf32, #tpu.memory_space<vmem>>, %arg11: memref<8x1xf32, #tpu.memory_space<vmem>>, %arg12: memref<1x256xf32, #tpu.memory_space<vmem>>, %arg13: memref<8x256xf32, #tpu.memory_space<vmem>>) attributes {dimension_semantics = [#tpu.dimension_semantics<parallel>], iteration_bounds = array<i64: 2>, scalar_prefetch = 0 : i64, scratch_operands = 0 : i64, tpu.core_type = #tpu.core_type<tc>, window_params = [{transform_indices = @transform_0, window_bounds = array<i64: 8, 256>}, {pipeline_mode = #tpu.pipeline_mode<synchronous>, transform_indices = @transform_1, window_bounds = array<i64: 8, 8>}, {pipeline_mode = #tpu.pipeline_mode<synchronous>, transform_indices = @transform_2, window_bounds = array<i64: 8, 1>}, {pipeline_mode = #tpu.pipeline_mode<synchronous>, transform_indices = @transform_3, window_bounds = array<i64: 8, 32>}, {pipeline_mode = #tpu.pipeline_mode<synchronous>, transform_indices = @transform_4, window_bounds = array<i64: 8, 1>}, {pipeline_mode = #tpu.pipeline_mode<synchronous>, transform_indices = @transform_5, window_bounds = array<i64: 8, 8>}, {pipeline_mode = #tpu.pipeline_mode<synchronous>, transform_indices = @transform_6, window_bounds = array<i64: 8, 1>}, {pipeline_mode = #tpu.pipeline_mode<synchronous>, transform_indices = @transform_7, window_bounds = array<i64: 8, 32>}, {pipeline_mode = #tpu.pipeline_mode<synchronous>, transform_indices = @transform_8, window_bounds = array<i64: 8, 1>}, {pipeline_mode = #tpu.pipeline_mode<synchronous>, transform_indices = @transform_9, window_bounds = array<i64: 8, 8>}, {pipeline_mode = #tpu.pipeline_mode<synchronous>, transform_indices = @transform_10, window_bounds = array<i64: 8, 1>}, {pipeline_mode = #tpu.pipeline_mode<synchronous>, transform_indices = @transform_11, window_bounds = array<i64: 1, 256>}, {transform_indices = @transform_12, window_bounds = array<i64: 8, 256>}]} {
    %c0 = arith.constant 0 : index
    %c0_0 = arith.constant 0 : index
    %0 = vector.load %arg1[%c0, %c0_0] : memref<8x256xf32, #tpu.memory_space<vmem>>, vector<8x256xf32>
    %c0_1 = arith.constant 0 : index
    %c0_2 = arith.constant 0 : index
    %1 = vector.load %arg2[%c0_1, %c0_2] : memref<8x8xf32, #tpu.memory_space<vmem>>, vector<8x8xf32>
    %cst = arith.constant dense<0.000000e+00> : vector<8x256xf32>
    %2 = tpu.matmul %1, %0, %cst {dimension_numbers = #tpu.dot_dimension_numbers<[1], [0], [0], [1], [0, 0, 1, 1], [], []>} : vector<8x8xf32>, vector<8x256xf32>, vector<8x256xf32> -> vector<8x256xf32>
    %c0_3 = arith.constant 0 : index
    %c0_4 = arith.constant 0 : index
    %3 = vector.load %arg3[%c0_3, %c0_4] : memref<8x1xf32, #tpu.memory_space<vmem>>, vector<8x1xf32>
    %4 = vector.broadcast %3 : vector<8x1xf32> to vector<8x256xf32>
    %5 = arith.addf %2, %4 : vector<8x256xf32>
    %6 = arith.negf %5 : vector<8x256xf32>
    %7 = math.exp %6 : vector<8x256xf32>
    %cst_5 = arith.constant 1.000000e+00 : f32
    %8 = vector.broadcast %cst_5 : f32 to vector<8x256xf32>
    %9 = arith.addf %8, %7 : vector<8x256xf32>
    %10 = arith.divf %8, %9 : vector<8x256xf32>
    %11 = arith.mulf %5, %10 : vector<8x256xf32>
    %c255_i32 = arith.constant 255 : i32
    %12 = tpu.dynamic_rotate %11 by %c255_i32 dim 1 : vector<8x256xf32>, i32 -> vector<8x256xf32>
    %c240_i32 = arith.constant 240 : i32
    %13 = tpu.dynamic_rotate %11 by %c240_i32 dim 1 : vector<8x256xf32>, i32 -> vector<8x256xf32>
    %c239_i32 = arith.constant 239 : i32
    %14 = tpu.dynamic_rotate %11 by %c239_i32 dim 1 : vector<8x256xf32>, i32 -> vector<8x256xf32>
    %15 = tpu.concatenate %11, %12, %13, %14 in 0 : vector<8x256xf32>, vector<8x256xf32>, vector<8x256xf32>, vector<8x256xf32> -> vector<32x256xf32>
    %c0_6 = arith.constant 0 : index
    %c0_7 = arith.constant 0 : index
    %16 = vector.load %arg4[%c0_6, %c0_7] : memref<8x32xf32, #tpu.memory_space<vmem>>, vector<8x32xf32>
    %cst_8 = arith.constant dense<0.000000e+00> : vector<8x256xf32>
    %17 = tpu.matmul %16, %15, %cst_8 {dimension_numbers = #tpu.dot_dimension_numbers<[1], [0], [0], [1], [0, 0, 1, 1], [], []>} : vector<8x32xf32>, vector<32x256xf32>, vector<8x256xf32> -> vector<8x256xf32>
    %c0_9 = arith.constant 0 : index
    %c0_10 = arith.constant 0 : index
    %18 = vector.load %arg5[%c0_9, %c0_10] : memref<8x1xf32, #tpu.memory_space<vmem>>, vector<8x1xf32>
    %19 = vector.broadcast %18 : vector<8x1xf32> to vector<8x256xf32>
    %20 = arith.addf %17, %19 : vector<8x256xf32>
    %21 = arith.negf %20 : vector<8x256xf32>
    %22 = math.exp %21 : vector<8x256xf32>
    %cst_11 = arith.constant 1.000000e+00 : f32
    %23 = vector.broadcast %cst_11 : f32 to vector<8x256xf32>
    %24 = arith.addf %23, %22 : vector<8x256xf32>
    %25 = arith.divf %23, %24 : vector<8x256xf32>
    %26 = arith.mulf %20, %25 : vector<8x256xf32>
    %c0_12 = arith.constant 0 : index
    %c0_13 = arith.constant 0 : index
    %27 = vector.load %arg6[%c0_12, %c0_13] : memref<8x8xf32, #tpu.memory_space<vmem>>, vector<8x8xf32>
    %cst_14 = arith.constant dense<0.000000e+00> : vector<8x256xf32>
    %28 = tpu.matmul %27, %26, %cst_14 {dimension_numbers = #tpu.dot_dimension_numbers<[1], [0], [0], [1], [0, 0, 1, 1], [], []>} : vector<8x8xf32>, vector<8x256xf32>, vector<8x256xf32> -> vector<8x256xf32>
    %c0_15 = arith.constant 0 : index
    %c0_16 = arith.constant 0 : index
    %29 = vector.load %arg7[%c0_15, %c0_16] : memref<8x1xf32, #tpu.memory_space<vmem>>, vector<8x1xf32>
    %30 = vector.broadcast %29 : vector<8x1xf32> to vector<8x256xf32>
    %31 = arith.addf %28, %30 : vector<8x256xf32>
    %cst_17 = arith.constant 0.000000e+00 : f32
    %32 = vector.broadcast %cst_17 : f32 to vector<8x256xf32>
    %33 = arith.cmpf ogt, %31, %32 : vector<8x256xf32>
    %34 = arith.extui %33 : vector<8x256xi1> to vector<8x256xi32>
    %35 = arith.sitofp %34 : vector<8x256xi32> to vector<8x256xf32>
    %cst_18 = arith.constant 0.000000e+00 : f32
    %36 = vector.broadcast %cst_18 : f32 to vector<8x256xf32>
    %37 = arith.cmpf olt, %31, %36 : vector<8x256xf32>
    %38 = arith.extui %37 : vector<8x256xi1> to vector<8x256xi32>
    %39 = arith.sitofp %38 : vector<8x256xi32> to vector<8x256xf32>
    %40 = arith.subf %35, %39 : vector<8x256xf32>
    %c0_19 = arith.constant 0 : index
    %c0_20 = arith.constant 0 : index
    %41 = vector.load %arg12[%c0_19, %c0_20] : memref<1x256xf32, #tpu.memory_space<vmem>>, vector<1x256xf32>
    %42 = vector.broadcast %41 : vector<1x256xf32> to vector<8x256xf32>
    %43 = arith.mulf %40, %42 : vector<8x256xf32>
    %c1_i32 = arith.constant 1 : i32
    %44 = tpu.dynamic_rotate %43 by %c1_i32 dim 1 : vector<8x256xf32>, i32 -> vector<8x256xf32>
    %c16_i32 = arith.constant 16 : i32
    %45 = tpu.dynamic_rotate %43 by %c16_i32 dim 1 : vector<8x256xf32>, i32 -> vector<8x256xf32>
    %c17_i32 = arith.constant 17 : i32
    %46 = tpu.dynamic_rotate %43 by %c17_i32 dim 1 : vector<8x256xf32>, i32 -> vector<8x256xf32>
    %47 = tpu.concatenate %43, %44, %45, %46 in 0 : vector<8x256xf32>, vector<8x256xf32>, vector<8x256xf32>, vector<8x256xf32> -> vector<32x256xf32>
    %c0_21 = arith.constant 0 : index
    %c0_22 = arith.constant 0 : index
    %48 = vector.load %arg8[%c0_21, %c0_22] : memref<8x32xf32, #tpu.memory_space<vmem>>, vector<8x32xf32>
    %cst_23 = arith.constant dense<0.000000e+00> : vector<8x256xf32>
    %49 = tpu.matmul %48, %47, %cst_23 {dimension_numbers = #tpu.dot_dimension_numbers<[1], [0], [0], [1], [0, 0, 1, 1], [], []>} : vector<8x32xf32>, vector<32x256xf32>, vector<8x256xf32> -> vector<8x256xf32>
    %c0_24 = arith.constant 0 : index
    %c0_25 = arith.constant 0 : index
    %50 = vector.load %arg9[%c0_24, %c0_25] : memref<8x1xf32, #tpu.memory_space<vmem>>, vector<8x1xf32>
    %51 = vector.broadcast %50 : vector<8x1xf32> to vector<8x256xf32>
    %52 = arith.addf %49, %51 : vector<8x256xf32>
    %53 = arith.negf %52 : vector<8x256xf32>
    %54 = math.exp %53 : vector<8x256xf32>
    %cst_26 = arith.constant 1.000000e+00 : f32
    %55 = vector.broadcast %cst_26 : f32 to vector<8x256xf32>
    %56 = arith.addf %55, %54 : vector<8x256xf32>
    %57 = arith.divf %55, %56 : vector<8x256xf32>
    %58 = arith.mulf %52, %57 : vector<8x256xf32>
    %c0_27 = arith.constant 0 : index
    %c0_28 = arith.constant 0 : index
    %59 = vector.load %arg10[%c0_27, %c0_28] : memref<8x8xf32, #tpu.memory_space<vmem>>, vector<8x8xf32>
    %cst_29 = arith.constant dense<0.000000e+00> : vector<8x256xf32>
    %60 = tpu.matmul %59, %58, %cst_29 {dimension_numbers = #tpu.dot_dimension_numbers<[1], [0], [0], [1], [0, 0, 1, 1], [], []>} : vector<8x8xf32>, vector<8x256xf32>, vector<8x256xf32> -> vector<8x256xf32>
    %c0_30 = arith.constant 0 : index
    %c0_31 = arith.constant 0 : index
    %61 = vector.load %arg11[%c0_30, %c0_31] : memref<8x1xf32, #tpu.memory_space<vmem>>, vector<8x1xf32>
    %62 = vector.broadcast %61 : vector<8x1xf32> to vector<8x256xf32>
    %63 = arith.addf %60, %62 : vector<8x256xf32>
    %64 = arith.negf %63 : vector<8x256xf32>
    %65 = math.exp %64 : vector<8x256xf32>
    %cst_32 = arith.constant 1.000000e+00 : f32
    %66 = vector.broadcast %cst_32 : f32 to vector<8x256xf32>
    %67 = arith.addf %66, %65 : vector<8x256xf32>
    %68 = arith.divf %66, %67 : vector<8x256xf32>
    %69 = arith.mulf %63, %68 : vector<8x256xf32>
    %c0_33 = arith.constant 0 : index
    %c0_34 = arith.constant 0 : index
    %70 = vector.load %arg13[%c0_33, %c0_34] : memref<8x256xf32, #tpu.memory_space<vmem>>, vector<8x256xf32>
    tpu.vector_store %arg13[%c0_33, %c0_34], %69 {strides = array<i32>} : memref<8x256xf32, #tpu.memory_space<vmem>>, vector<8x256xf32>,
    return
  }
  func.func @transform_0(%arg0: i32) -> (i32, i32) {
    %c0_i32 = arith.constant 0 : i32
    %c0_i32_0 = arith.constant 0 : i32
    return %c0_i32, %arg0 : i32, i32
  }
  func.func @transform_1(%arg0: i32) -> (i32, i32) {
    %c0_i32 = arith.constant 0 : i32
    %c0_i32_0 = arith.constant 0 : i32
    %c0_i32_1 = arith.constant 0 : i32
    return %c0_i32, %c0_i32_0 : i32, i32
  }
  func.func @transform_2(%arg0: i32) -> (i32, i32) {
    %c0_i32 = arith.constant 0 : i32
    %c0_i32_0 = arith.constant 0 : i32
    %c0_i32_1 = arith.constant 0 : i32
    return %c0_i32, %c0_i32_0 : i32, i32
  }
  func.func @transform_3(%arg0: i32) -> (i32, i32) {
    %c0_i32 = arith.constant 0 : i32
    %c0_i32_0 = arith.constant 0 : i32
    %c0_i32_1 = arith.constant 0 : i32
    return %c0_i32, %c0_i32_0 : i32, i32
  }
  func.func @transform_4(%arg0: i32) -> (i32, i32) {
    %c0_i32 = arith.constant 0 : i32
    %c0_i32_0 = arith.constant 0 : i32
    %c0_i32_1 = arith.constant 0 : i32
    return %c0_i32, %c0_i32_0 : i32, i32
  }
  func.func @transform_5(%arg0: i32) -> (i32, i32) {
    %c0_i32 = arith.constant 0 : i32
    %c0_i32_0 = arith.constant 0 : i32
    %c0_i32_1 = arith.constant 0 : i32
    return %c0_i32, %c0_i32_0 : i32, i32
  }
  func.func @transform_6(%arg0: i32) -> (i32, i32) {
    %c0_i32 = arith.constant 0 : i32
    %c0_i32_0 = arith.constant 0 : i32
    %c0_i32_1 = arith.constant 0 : i32
    return %c0_i32, %c0_i32_0 : i32, i32
  }
  func.func @transform_7(%arg0: i32) -> (i32, i32) {
    %c0_i32 = arith.constant 0 : i32
    %c0_i32_0 = arith.constant 0 : i32
    %c0_i32_1 = arith.constant 0 : i32
    return %c0_i32, %c0_i32_0 : i32, i32
  }
  func.func @transform_8(%arg0: i32) -> (i32, i32) {
    %c0_i32 = arith.constant 0 : i32
    %c0_i32_0 = arith.constant 0 : i32
    %c0_i32_1 = arith.constant 0 : i32
    return %c0_i32, %c0_i32_0 : i32, i32
  }
  func.func @transform_9(%arg0: i32) -> (i32, i32) {
    %c0_i32 = arith.constant 0 : i32
    %c0_i32_0 = arith.constant 0 : i32
    %c0_i32_1 = arith.constant 0 : i32
    return %c0_i32, %c0_i32_0 : i32, i32
  }
  func.func @transform_10(%arg0: i32) -> (i32, i32) {
    %c0_i32 = arith.constant 0 : i32
    %c0_i32_0 = arith.constant 0 : i32
    %c0_i32_1 = arith.constant 0 : i32
    return %c0_i32, %c0_i32_0 : i32, i32
  }
  func.func @transform_11(%arg0: i32) -> (i32, i32) {
    %c0_i32 = arith.constant 0 : i32
    %c0_i32_0 = arith.constant 0 : i32
    %c0_i32_1 = arith.constant 0 : i32
    return %c0_i32, %c0_i32_0 : i32, i32
  }
  func.func @transform_12(%arg0: i32) -> (i32, i32) {
    %c0_i32 = arith.constant 0 : i32
    %c0_i32_0 = arith.constant 0 : i32
    return %c0_i32, %arg0 : i32, i32
  }
}

</mosaic_0001>

<llo_original>
// kernel: vae_forward.1
$region0: #{vae_forward.1}
  #allocation0 [shape = 'u32[]', space=smem, size = 0x4, offset = 0x4, fixed_abs, tag = 'smem constant byte address 0x4 - core index']
  #allocation1 [shape = 'u32[144,128]{1,0:T(1,128)}', space=vmem, size = 0x12000, scoped, tag = 'internal scratch']
  %s0 = inlined_call_operand.vmem [shape: f32[8,512], index: 0, kind: input, shape index: {}]
  %s1 = inlined_call_operand.vmem [shape: f32[8,8], index: 1, kind: input, shape index: {}]
  %s2 = inlined_call_operand.vmem [shape: f32[8,1], index: 2, kind: input, shape index: {}]
  %s3 = inlined_call_operand.vmem [shape: f32[8,32], index: 3, kind: input, shape index: {}]
  %s4 = inlined_call_operand.vmem [shape: f32[8,1], index: 4, kind: input, shape index: {}]
  %s5 = inlined_call_operand.vmem [shape: f32[8,8], index: 5, kind: input, shape index: {}]
  %s6 = inlined_call_operand.vmem [shape: f32[8,1], index: 6, kind: input, shape index: {}]
  %s7 = inlined_call_operand.vmem [shape: f32[8,32], index: 7, kind: input, shape index: {}]
  %s8 = inlined_call_operand.vmem [shape: f32[8,1], index: 8, kind: input, shape index: {}]
  %s9 = inlined_call_operand.vmem [shape: f32[8,8], index: 9, kind: input, shape index: {}]
  %s10 = inlined_call_operand.vmem [shape: f32[8,1], index: 10, kind: input, shape index: {}]
  %s11 = inlined_call_operand.vmem [shape: f32[1,256], index: 11, kind: input, shape index: {}]
  %s12 = inlined_call_operand.vmem [shape: f32[8,512], index: 12, kind: output, shape index: {}]
  %s13 = sld [smem:[#allocation0]]
  $region81: #{vae_forward.1} parent=0
    _
  %s15 = ssub.s32 1, %s13
  %s16 = scalar_select 0, %s15, %s13
  loop: start=0, step=1, limit=4
  $region2: #{vae_forward.1} parent=0 // loop_pre_header
    _
  $region3: #{vae_forward.1} parent=0 // loop_header
    %s18 = sphi 0, %s22
    %p19 = scmp.ge.s32.totalorder %s18, 4
    %s28 = sphi 0, %s30
    %s31 = sphi 0, %s28
    %s32 = sphi 0, %s31
    %s48 = sphi 0, %s32
    %s52 = sphi 0, %s52
    %s54 = sphi 0, %s52
    %s55 = sphi 0, %s54
    %s69 = sphi 0, %s55
    %s73 = sphi 0, %s73
    %s75 = sphi 0, %s73
    %s76 = sphi 0, %s75
    %s90 = sphi 0, %s76
    %s94 = sphi 0, %s94
    %s96 = sphi 0, %s94
    %s97 = sphi 0, %s96
    %s111 = sphi 0, %s97
    %s115 = sphi 0, %s115
    %s117 = sphi 0, %s115
    %s118 = sphi 0, %s117
    %s132 = sphi 0, %s118
    %s136 = sphi 0, %s136
    %s138 = sphi 0, %s136
    %s139 = sphi 0, %s138
    %s153 = sphi 0, %s139
    %s157 = sphi 0, %s157
    %s159 = sphi 0, %s157
    %s160 = sphi 0, %s159
    %s174 = sphi 0, %s160
    %s178 = sphi 0, %s178
    %s180 = sphi 0, %s178
    %s181 = sphi 0, %s180
    %s195 = sphi 0, %s181
    %s199 = sphi 0, %s199
    %s201 = sphi 0, %s199
    %s202 = sphi 0, %s201
    %s216 = sphi 0, %s202
    %s220 = sphi 0, %s220
    %s222 = sphi 0, %s220
    %s223 = sphi 0, %s222
    %s237 = sphi 0, %s223
    %s241 = sphi 0, %s241
    %s243 = sphi 0, %s241
    %s244 = sphi 0, %s243
    %s258 = sphi 0, %s244
    %s262 = sphi 0, %s262
    %s264 = sphi 0, %s262
    %s265 = sphi 0, %s264
    %s279 = sphi 0, %s265
    %s285 = sphi 0, %s287
    %s288 = sphi 0, %s285
    %s289 = sphi 0, %s288
    %s305 = sphi 0, %s289
  $region4: #{vae_forward.1} parent=0 // loop_header_branch
    %21 = sbr.rel (%p19) target = $region8
  $region5: #{vae_forward.1} parent=0 // loop_body
    %s23 = ssub.s32 %s18, 1
    %s24 = ssub.s32 %s18, 2
    %s25 = sadd.s32 %s18, 1
    %s26 = ssub.s32 %s18, %s25
    %p27 = scmp.eq.s32.totalorder %s26, 0
    %s29 = sadd.s32 %s28, 1
    %s30 = scalar_select %p27, %s28, %s29
    %p33 = pneg %p27
    %p34 = scmp.eq.s32.totalorder %s18, 1
    %p35 = por %p33, %p34
    %p36 = scmp.ne.s32.totalorder %s28, %s31
    %p37 = scmp.eq.s32.totalorder %s18, 0
    %p38 = por %p36, %p37
    %p39 = scmp.ne.s32.totalorder %s28, %s31
    %p40 = scmp.eq.s32.totalorder %s23, 1
    %p41 = por %p39, %p40
    %p42 = scmp.ne.s32.totalorder %s31, %s32
    %p43 = scmp.eq.s32.totalorder %s23, 0
    %p44 = por %p42, %p43
    %p45 = scmp.ne.s32.totalorder %s31, %s32
    %p46 = scmp.eq.s32.totalorder %s24, 1
    %p47 = por %p45, %p46
    %p49 = scmp.ne.s32.totalorder %s32, %s48
    %p50 = scmp.eq.s32.totalorder %s24, 0
    %p51 = por %p49, %p50
    %s53 = sadd.s32 %s52, 1
    %p56 = scmp.eq.s32.totalorder %s18, 1
    %p57 = scmp.ne.s32.totalorder %s52, %s54
    %p58 = scmp.eq.s32.totalorder %s18, 0
    %p59 = por %p57, %p58
    %p60 = scmp.ne.s32.totalorder %s52, %s54
    %p61 = scmp.eq.s32.totalorder %s23, 1
    %p62 = por %p60, %p61
    %p63 = scmp.ne.s32.totalorder %s54, %s55
    %p64 = scmp.eq.s32.totalorder %s23, 0
    %p65 = por %p63, %p64
    %p66 = scmp.ne.s32.totalorder %s54, %s55
    %p67 = scmp.eq.s32.totalorder %s24, 1
    %p68 = por %p66, %p67
    %p70 = scmp.ne.s32.totalorder %s55, %s69
    %p71 = scmp.eq.s32.totalorder %s24, 0
    %p72 = por %p70, %p71
    %s74 = sadd.s32 %s73, 1
    %p77 = scmp.eq.s32.totalorder %s18, 1
    %p78 = scmp.ne.s32.totalorder %s73, %s75
    %p79 = scmp.eq.s32.totalorder %s18, 0
    %p80 = por %p78, %p79
    %p81 = scmp.ne.s32.totalorder %s73, %s75
    %p82 = scmp.eq.s32.totalorder %s23, 1
    %p83 = por %p81, %p82
    %p84 = scmp.ne.s32.totalorder %s75, %s76
    %p85 = scmp.eq.s32.totalorder %s23, 0
    %p86 = por %p84, %p85
    %p87 = scmp.ne.s32.totalorder %s75, %s76
    %p88 = scmp.eq.s32.totalorder %s24, 1
    %p89 = por %p87, %p88
    %p91 = scmp.ne.s32.totalorder %s76, %s90
    %p92 = scmp.eq.s32.totalorder %s24, 0
    %p93 = por %p91, %p92
    %s95 = sadd.s32 %s94, 1
    %p98 = scmp.eq.s32.totalorder %s18, 1
    %p99 = scmp.ne.s32.totalorder %s94, %s96
    %p100 = scmp.eq.s32.totalorder %s18, 0
    %p101 = por %p99, %p100
    %p102 = scmp.ne.s32.totalorder %s94, %s96
    %p103 = scmp.eq.s32.totalorder %s23, 1
    %p104 = por %p102, %p103
    %p105 = scmp.ne.s32.totalorder %s96, %s97
    %p106 = scmp.eq.s32.totalorder %s23, 0
    %p107 = por %p105, %p106
    %p108 = scmp.ne.s32.totalorder %s96, %s97
    %p109 = scmp.eq.s32.totalorder %s24, 1
    %p110 = por %p108, %p109
    %p112 = scmp.ne.s32.totalorder %s97, %s111
    %p113 = scmp.eq.s32.totalorder %s24, 0
    %p114 = por %p112, %p113
    %s116 = sadd.s32 %s115, 1
    %p119 = scmp.eq.s32.totalorder %s18, 1
    %p120 = scmp.ne.s32.totalorder %s115, %s117
    %p121 = scmp.eq.s32.totalorder %s18, 0
    %p122 = por %p120, %p121
    %p123 = scmp.ne.s32.totalorder %s115, %s117
    %p124 = scmp.eq.s32.totalorder %s23, 1
    %p125 = por %p123, %p124
    %p126 = scmp.ne.s32.totalorder %s117, %s118
    %p127 = scmp.eq.s32.totalorder %s23, 0
    %p128 = por %p126, %p127
    %p129 = scmp.ne.s32.totalorder %s117, %s118
    %p130 = scmp.eq.s32.totalorder %s24, 1
    %p131 = por %p129, %p130
    %p133 = scmp.ne.s32.totalorder %s118, %s132
    %p134 = scmp.eq.s32.totalorder %s24, 0
    %p135 = por %p133, %p134
    %s137 = sadd.s32 %s136, 1
    %p140 = scmp.eq.s32.totalorder %s18, 1
    %p141 = scmp.ne.s32.totalorder %s136, %s138
    %p142 = scmp.eq.s32.totalorder %s18, 0
    %p143 = por %p141, %p142
    %p144 = scmp.ne.s32.totalorder %s136, %s138
    %p145 = scmp.eq.s32.totalorder %s23, 1
    %p146 = por %p144, %p145
    %p147 = scmp.ne.s32.totalorder %s138, %s139
    %p148 = scmp.eq.s32.totalorder %s23, 0
    %p149 = por %p147, %p148
    %p150 = scmp.ne.s32.totalorder %s138, %s139
    %p151 = scmp.eq.s32.totalorder %s24, 1
    %p152 = por %p150, %p151
    %p154 = scmp.ne.s32.totalorder %s139, %s153
    %p155 = scmp.eq.s32.totalorder %s24, 0
    %p156 = por %p154, %p155
    %s158 = sadd.s32 %s157, 1
    %p161 = scmp.eq.s32.totalorder %s18, 1
    %p162 = scmp.ne.s32.totalorder %s157, %s159
    %p163 = scmp.eq.s32.totalorder %s18, 0
    %p164 = por %p162, %p163
    %p165 = scmp.ne.s32.totalorder %s157, %s159
    %p166 = scmp.eq.s32.totalorder %s23, 1
    %p167 = por %p165, %p166
    %p168 = scmp.ne.s32.totalorder %s159, %s160
    %p169 = scmp.eq.s32.totalorder %s23, 0
    %p170 = por %p168, %p169
    %p171 = scmp.ne.s32.totalorder %s159, %s160
    %p172 = scmp.eq.s32.totalorder %s24, 1
    %p173 = por %p171, %p172
    %p175 = scmp.ne.s32.totalorder %s160, %s174
    %p176 = scmp.eq.s32.totalorder %s24, 0
    %p177 = por %p175, %p176
    %s179 = sadd.s32 %s178, 1
    %p182 = scmp.eq.s32.totalorder %s18, 1
    %p183 = scmp.ne.s32.totalorder %s178, %s180
    %p184 = scmp.eq.s32.totalorder %s18, 0
    %p185 = por %p183, %p184
    %p186 = scmp.ne.s32.totalorder %s178, %s180
    %p187 = scmp.eq.s32.totalorder %s23, 1
    %p188 = por %p186, %p187
    %p189 = scmp.ne.s32.totalorder %s180, %s181
    %p190 = scmp.eq.s32.totalorder %s23, 0
    %p191 = por %p189, %p190
    %p192 = scmp.ne.s32.totalorder %s180, %s181
    %p193 = scmp.eq.s32.totalorder %s24, 1
    %p194 = por %p192, %p193
    %p196 = scmp.ne.s32.totalorder %s181, %s195
    %p197 = scmp.eq.s32.totalorder %s24, 0
    %p198 = por %p196, %p197
    %s200 = sadd.s32 %s199, 1
    %p203 = scmp.eq.s32.totalorder %s18, 1
    %p204 = scmp.ne.s32.totalorder %s199, %s201
    %p205 = scmp.eq.s32.totalorder %s18, 0
    %p206 = por %p204, %p205
    %p207 = scmp.ne.s32.totalorder %s199, %s201
    %p208 = scmp.eq.s32.totalorder %s23, 1
    %p209 = por %p207, %p208
    %p210 = scmp.ne.s32.totalorder %s201, %s202
    %p211 = scmp.eq.s32.totalorder %s23, 0
    %p212 = por %p210, %p211
    %p213 = scmp.ne.s32.totalorder %s201, %s202
    %p214 = scmp.eq.s32.totalorder %s24, 1
    %p215 = por %p213, %p214
    %p217 = scmp.ne.s32.totalorder %s202, %s216
    %p218 = scmp.eq.s32.totalorder %s24, 0
    %p219 = por %p217, %p218
    %s221 = sadd.s32 %s220, 1
    %p224 = scmp.eq.s32.totalorder %s18, 1
    %p225 = scmp.ne.s32.totalorder %s220, %s222
    %p226 = scmp.eq.s32.totalorder %s18, 0
    %p227 = por %p225, %p226
    %p228 = scmp.ne.s32.totalorder %s220, %s222
    %p229 = scmp.eq.s32.totalorder %s23, 1
    %p230 = por %p228, %p229
    %p231 = scmp.ne.s32.totalorder %s222, %s223
    %p232 = scmp.eq.s32.totalorder %s23, 0
    %p233 = por %p231, %p232
    %p234 = scmp.ne.s32.totalorder %s222, %s223
    %p235 = scmp.eq.s32.totalorder %s24, 1
    %p236 = por %p234, %p235
    %p238 = scmp.ne.s32.totalorder %s223, %s237
    %p239 = scmp.eq.s32.totalorder %s24, 0
    %p240 = por %p238, %p239
    %s242 = sadd.s32 %s241, 1
    %p245 = scmp.eq.s32.totalorder %s18, 1
    %p246 = scmp.ne.s32.totalorder %s241, %s243
    %p247 = scmp.eq.s32.totalorder %s18, 0
    %p248 = por %p246, %p247
    %p249 = scmp.ne.s32.totalorder %s241, %s243
    %p250 = scmp.eq.s32.totalorder %s23, 1
    %p251 = por %p249, %p250
    %p252 = scmp.ne.s32.totalorder %s243, %s244
    %p253 = scmp.eq.s32.totalorder %s23, 0
    %p254 = por %p252, %p253
    %p255 = scmp.ne.s32.totalorder %s243, %s244
    %p256 = scmp.eq.s32.totalorder %s24, 1
    %p257 = por %p255, %p256
    %p259 = scmp.ne.s32.totalorder %s244, %s258
    %p260 = scmp.eq.s32.totalorder %s24, 0
    %p261 = por %p259, %p260
    %s263 = sadd.s32 %s262, 1
    %p266 = scmp.eq.s32.totalorder %s18, 1
    %p267 = scmp.ne.s32.totalorder %s262, %s264
    %p268 = scmp.eq.s32.totalorder %s18, 0
    %p269 = por %p267, %p268
    %p270 = scmp.ne.s32.totalorder %s262, %s264
    %p271 = scmp.eq.s32.totalorder %s23, 1
    %p272 = por %p270, %p271
    %p273 = scmp.ne.s32.totalorder %s264, %s265
    %p274 = scmp.eq.s32.totalorder %s23, 0
    %p275 = por %p273, %p274
    %p276 = scmp.ne.s32.totalorder %s264, %s265
    %p277 = scmp.eq.s32.totalorder %s24, 1
    %p278 = por %p276, %p277
    %p280 = scmp.ne.s32.totalorder %s265, %s279
    %p281 = scmp.eq.s32.totalorder %s24, 0
    %p282 = por %p280, %p281
    %s283 = ssub.s32 %s18, %s25
    %p284 = scmp.eq.s32.totalorder %s283, 0
    %s286 = sadd.s32 %s285, 1
    %s287 = scalar_select %p284, %s285, %s286
    %p290 = pneg %p284
    %p291 = scmp.eq.s32.totalorder %s18, 1
    %p292 = por %p290, %p291
    %p293 = scmp.ne.s32.totalorder %s285, %s288
    %p294 = scmp.eq.s32.totalorder %s18, 0
    %p295 = por %p293, %p294
    %p296 = scmp.ne.s32.totalorder %s285, %s288
    %p297 = scmp.eq.s32.totalorder %s23, 1
    %p298 = por %p296, %p297
    %p299 = scmp.ne.s32.totalorder %s288, %s289
    %p300 = scmp.eq.s32.totalorder %s23, 0
    %p301 = por %p299, %p300
    %p302 = scmp.ne.s32.totalorder %s288, %s289
    %p303 = scmp.eq.s32.totalorder %s24, 1
    %p304 = por %p302, %p303
    %p306 = scmp.ne.s32.totalorder %s289, %s305
    %p307 = scmp.eq.s32.totalorder %s24, 0
    %p308 = por %p306, %p307
    %p309 = scmp.le.s32.totalorder 1, %s18
    %p310 = scmp.lt.s32.totalorder %s18, 3
    %p311 = pnand %p309, %p310
    %p312 = pneg %p311
    // Predicated region
    $region9: #{vae_forward.1} parent=5 // pred_check
      _
    $region10: #{vae_forward.1} parent=5 // pred_check_branch
      %314 = sbr.rel (%p311) target = $region12
    $region11: #{vae_forward.1} parent=5 // pred_region
      %s315 = ssub.s32 %s18, 1
      // Predicated region
      $region13: #{vae_forward.1} parent=11 // pred_check
        %p316 = pneg %p65
      $region14: #{vae_forward.1} parent=11 // pred_check_branch
        %318 = sbr.rel (%p316) target = $region16
      $region15: #{vae_forward.1} parent=11 // pred_region
        _
      $region16: #{vae_forward.1} parent=11 // pred_fallthru
        _
      // Predicated region
      $region17: #{vae_forward.1} parent=11 // pred_check
        %p319 = pneg %p86
      $region18: #{vae_forward.1} parent=11 // pred_check_branch
        %321 = sbr.rel (%p319) target = $region20
      $region19: #{vae_forward.1} parent=11 // pred_region
        _
      $region20: #{vae_forward.1} parent=11 // pred_fallthru
        _
      // Predicated region
      $region21: #{vae_forward.1} parent=11 // pred_check
        %p322 = pneg %p107
      $region22: #{vae_forward.1} parent=11 // pred_check_branch
        %324 = sbr.rel (%p322) target = $region24
      $region23: #{vae_forward.1} parent=11 // pred_region
        _
      $region24: #{vae_forward.1} parent=11 // pred_fallthru
        _
      // Predicated region
      $region25: #{vae_forward.1} parent=11 // pred_check
        %p325 = pneg %p128
      $region26: #{vae_forward.1} parent=11 // pred_check_branch
        %327 = sbr.rel (%p325) target = $region28
      $region27: #{vae_forward.1} parent=11 // pred_region
        _
      $region28: #{vae_forward.1} parent=11 // pred_fallthru
        _
      // Predicated region
      $region29: #{vae_forward.1} parent=11 // pred_check
        %p328 = pneg %p149
      $region30: #{vae_forward.1} parent=11 // pred_check_branch
        %330 = sbr.rel (%p328) target = $region32
      $region31: #{vae_forward.1} parent=11 // pred_region
        _
      $region32: #{vae_forward.1} parent=11 // pred_fallthru
        _
      // Predicated region
      $region33: #{vae_forward.1} parent=11 // pred_check
        %p331 = pneg %p170
      $region34: #{vae_forward.1} parent=11 // pred_check_branch
        %333 = sbr.rel (%p331) target = $region36
      $region35: #{vae_forward.1} parent=11 // pred_region
        _
      $region36: #{vae_forward.1} parent=11 // pred_fallthru
        _
      // Predicated region
      $region37: #{vae_forward.1} parent=11 // pred_check
        %p334 = pneg %p191
      $region38: #{vae_forward.1} parent=11 // pred_check_branch
        %336 = sbr.rel (%p334) target = $region40
      $region39: #{vae_forward.1} parent=11 // pred_region
        _
      $region40: #{vae_forward.1} parent=11 // pred_fallthru
        _
      // Predicated region
      $region41: #{vae_forward.1} parent=11 // pred_check
        %p337 = pneg %p212
      $region42: #{vae_forward.1} parent=11 // pred_check_branch
        %339 = sbr.rel (%p337) target = $region44
      $region43: #{vae_forward.1} parent=11 // pred_region
        _
      $region44: #{vae_forward.1} parent=11 // pred_fallthru
        _
      // Predicated region
      $region45: #{vae_forward.1} parent=11 // pred_check
        %p340 = pneg %p233
      $region46: #{vae_forward.1} parent=11 // pred_check_branch
        %342 = sbr.rel (%p340) target = $region48
      $region47: #{vae_forward.1} parent=11 // pred_region
        _
      $region48: #{vae_forward.1} parent=11 // pred_fallthru
        _
      // Predicated region
      $region49: #{vae_forward.1} parent=11 // pred_check
        %p343 = pneg %p254
      $region50: #{vae_forward.1} parent=11 // pred_check_branch
        %345 = sbr.rel (%p343) target = $region52
      $region51: #{vae_forward.1} parent=11 // pred_region
        _
      $region52: #{vae_forward.1} parent=11 // pred_fallthru
        _
      // Predicated region
      $region53: #{vae_forward.1} parent=11 // pred_check
        %p346 = pneg %p275
      $region54: #{vae_forward.1} parent=11 // pred_check_branch
        %348 = sbr.rel (%p346) target = $region56
      $region55: #{vae_forward.1} parent=11 // pred_region
        _
      $region56: #{vae_forward.1} parent=11 // pred_fallthru
        _
    $region12: #{vae_forward.1} parent=5 // pred_fallthru
      _
    %p349 = scmp.lt.s32.totalorder %s18, 2
    // Predicated region
    $region57: #{vae_forward.1} parent=5 // pred_check
      %p350 = pneg %p349
    $region58: #{vae_forward.1} parent=5 // pred_check_branch
      %352 = sbr.rel (%p350) target = $region60
    $region59: #{vae_forward.1} parent=5 // pred_region
      // Predicated region
      $region61: #{vae_forward.1} parent=59 // pred_check
        %p353 = pneg %p38
      $region62: #{vae_forward.1} parent=59 // pred_check_branch
        %355 = sbr.rel (%p353) target = $region64
      $region63: #{vae_forward.1} parent=59 // pred_region
        %s356 = smul.u32 2, %s18
        %p357 = scmp.lt.s32.totalorder %s356, 3
        %s358 = scalar_select %p357, %s356, 3
        %s359 = smul.addr %s358, 8
        %s360 = scalar_lea.vmem %s0, %s359
        %s361 = smul.u32 2, %s18
      $region64: #{vae_forward.1} parent=59 // pred_fallthru
        _
    $region60: #{vae_forward.1} parent=5 // pred_fallthru
      _
    %p362 = scmp.le.s32.totalorder 1, %s18
    %p363 = scmp.lt.s32.totalorder %s18, 3
    %p364 = pnand %p362, %p363
    %p365 = pneg %p364
    // Predicated region
    $region65: #{vae_forward.1} parent=5 // pred_check
      _
    $region66: #{vae_forward.1} parent=5 // pred_check_branch
      %367 = sbr.rel (%p364) target = $region68
    $region67: #{vae_forward.1} parent=5 // pred_region
      %s368 = ssub.s32 %s18, 1
      %s369 = smul.u32 2, %s23
      %p370 = scmp.lt.s32.totalorder %s369, 3
      %s371 = scalar_select %p370, %s369, 3
      %s372 = smul.addr %s371, 8
      %s373 = scalar_lea.vmem %s0, %s372
      %p374 = pneg %p44
      %p375 = pneg %p41
      %p376 = pneg %p65
      %p377 = pneg %p62
      %p378 = pneg %p86
      %p379 = pneg %p83
      %p380 = pneg %p107
      %p381 = pneg %p104
      %p382 = pneg %p128
      %p383 = pneg %p125
      %p384 = pneg %p149
      %p385 = pneg %p146
      %p386 = pneg %p170
      %p387 = pneg %p167
      %p388 = pneg %p191
      %p389 = pneg %p188
      %p390 = pneg %p212
      %p391 = pneg %p209
      %p392 = pneg %p233
      %p393 = pneg %p230
      %p394 = pneg %p254
      %p395 = pneg %p251
      %p396 = pneg %p275
      %p397 = pneg %p272
      %p398 = pneg %p301
      %p399 = pneg %p298
      %s400 = smul.u32 2, %s23
      %p401 = scmp.lt.s32.totalorder %s400, 3
      %s402 = scalar_select %p401, %s400, 3
      %s403 = smul.addr %s402, 8
      %s404 = scalar_lea.vmem %s12, %s403
      %s405 = smul.u32 2, %s23
      %p406 = scmp.lt.s32.totalorder %s405, 3
      %s407 = scalar_select %p406, %s405, 3
      %s408 = smul.addr %s407, 8
      %s409 = scalar_lea.vmem %s0, %s408
      %s410 = smul.u32 2, %s23
      %s411 = smul.u32 2, %s23
      %p412 = scmp.lt.s32.totalorder %s411, 3
      %s413 = scalar_select %p412, %s411, 3
      %s414 = smul.addr %s413, 8
      %s415 = scalar_lea.vmem %s12, %s414
      %s416 = smul.u32 2, %s23
      %v417 = vld [vmem:[%s409] sm:$0xff]
      %v418 = vld [vmem:[%s409 + $0x8] sm:$0xff]
      %v419 = vld [vmem:[%s1] sm:$0xff]
      %v420 = vld [vmem:[%s2] sm:$0xff]
      %422 = vset.pattern.permute.xlu0 0
      %423 = vperm.xlu0 %422, %v420
      %v424 = vpop.permute.xlu0 %423
      %vm426 = vcmask 64512
      %v428 = vsel %vm426, %v419, 0
      %430 = vmatprep.subr.mxu0 %v418
      %431 = vmatpush1.msra.mxu0 %v417
      %432 = vmatprep.subr.mxu0 0.0
      %433 = vmatpush1.msra.mxu0 0.0
      %434 = vmatprep.subr.mxu0 0.0
      %435 = vmatpush1.msra.mxu0 0.0
      %436 = vmatprep.subr.mxu0 0.0
      %437 = vmatpush1.msra.mxu0 0.0
      %438 = vmatprep.subr.mxu0 0.0
      %439 = vmatpush1.msra.mxu0 0.0
      %440 = vmatprep.subr.mxu0 0.0
      %441 = vmatpush1.msra.mxu0 0.0
      %442 = vmatprep.subr.mxu0 0.0
      %443 = vmatpush1.msra.mxu0 0.0
      %444 = vmatprep.subr.mxu0 0.0
      %445 = vmatpush1.msra.mxu0 0.0
      %446 = vmatprep.subr.mxu0 0.0
      %447 = vmatpush1.msra.mxu0 0.0
      %448 = vmatprep.subr.mxu0 0.0
      %449 = vmatpush1.msra.mxu0 0.0
      %450 = vmatprep.subr.mxu0 0.0
      %451 = vmatpush1.msra.mxu0 0.0
      %452 = vmatprep.subr.mxu0 0.0
      %453 = vmatpush1.msra.mxu0 0.0
      %454 = vmatprep.subr.mxu0 0.0
      %455 = vmatpush1.msra.mxu0 0.0
      %456 = vmatprep.subr.mxu0 0.0
      %457 = vmatpush1.msra.mxu0 0.0
      %458 = vmatprep.subr.mxu0 0.0
      %459 = vmatpush1.msra.mxu0 0.0
      %460 = vmatprep.subr.mxu0 0.0
      %461 = vmatpush1.msra.mxu0 0.0
      %462 = vmatprep.subr.mxu0 0.0
      %463 = vmatpush1.msra.mxu0 0.0
      %464 = vmatprep.subr.mxu0 0.0
      %465 = vmatpush1.msra.mxu0 0.0
      %466 = vmatprep.subr.mxu0 0.0
      %467 = vmatpush1.msra.mxu0 0.0
      %468 = vmatprep.subr.mxu0 0.0
      %469 = vmatpush1.msra.mxu0 0.0
      %470 = vmatprep.subr.mxu0 0.0
      %471 = vmatpush1.msra.mxu0 0.0
      %472 = vmatprep.subr.mxu0 0.0
      %473 = vmatpush1.msra.mxu0 0.0
      %474 = vmatprep.subr.mxu0 0.0
      %475 = vmatpush1.msra.mxu0 0.0
      %476 = vmatprep.subr.mxu0 0.0
      %477 = vmatpush1.msra.mxu0 0.0
      %478 = vmatprep.subr.mxu0 0.0
      %479 = vmatpush1.msra.mxu0 0.0
      %480 = vmatprep.subr.mxu0 0.0
      %481 = vmatpush1.msra.mxu0 0.0
      %482 = vmatprep.subr.mxu0 0.0
      %483 = vmatpush1.msra.mxu0 0.0
      %484 = vmatprep.subr.mxu0 0.0
      %485 = vmatpush1.msra.mxu0 0.0
      %486 = vmatprep.subr.mxu0 0.0
      %487 = vmatpush1.msra.mxu0 0.0
      %488 = vmatprep.subr.mxu0 0.0
      %489 = vmatpush1.msra.mxu0 0.0
      %490 = vmatprep.subr.mxu0 0.0
      %491 = vmatpush1.msra.mxu0 0.0
      %492 = vmatprep.subr.mxu0 0.0
      %493 = vmatpush1.msra.mxu0 0.0
      %494 = vmatprep.mubr.f32.mxu0 0.0
      %495 = vmatmul.mubr.f32.gmra.mrb[0].mxu0 %v428
      %v496 = vpop.f32.mrb[0].mxu0
      %v497 = vadd.f32 %v424, %v496
      %v498 = vpop.f32.mrb[0].mxu0
      %v499 = vadd.f32 %v424, %v498
      %500 = vdwg.mxu0
      %v501 = vxor.u32 %v497, 2147483648
      %v502 = vxor.u32 %v499, 2147483648
      %v503 = vmul.f32 %v501, 1.442695
      %v504 = vpow.pop %v503
      %v505 = vmul.f32 %v502, 1.442695
      %v506 = vpow.pop %v505
      %v507 = vadd.f32 %v504, 1.0
      %v508 = vadd.f32 %v506, 1.0
      %v509 = vrcp.pop %v507
      %v510 = vmul.f32 1.0, %v509
      %v511 = vrcp.pop %v508
      %v512 = vmul.f32 1.0, %v511
      %v513 = vmul.f32 %v497, %v510
      %v514 = vmul.f32 %v499, %v512
      %515 = vrot.lane.b32.xlu0 %v513, 127
      %v516 = vpop.permute.xlu0 %515
      %517 = vrot.lane.b32.xlu0 %v514, 127
      %v518 = vpop.permute.xlu0 %517
      %v519 = vlaneseq
      %v520 = vand.u32 %v519, 127
      %vm521 = vcmp.lt.s32.totalorder %v520, 127
      %v522 = vsel %vm521, %v516, %v518
      %v523 = vsel %vm521, %v518, %v516
      %524 = vrot.lane.b32.xlu0 %v513, 112
      %v525 = vpop.permute.xlu0 %524
      %526 = vrot.lane.b32.xlu0 %v514, 112
      %v527 = vpop.permute.xlu0 %526
      %vm528 = vcmp.lt.s32.totalorder %v520, 112
      %v529 = vsel %vm528, %v525, %v527
      %v530 = vsel %vm528, %v527, %v525
      %531 = vrot.lane.b32.xlu0 %v513, 111
      %v532 = vpop.permute.xlu0 %531
      %533 = vrot.lane.b32.xlu0 %v514, 111
      %v534 = vpop.permute.xlu0 %533
      %vm535 = vcmp.lt.s32.totalorder %v520, 111
      %v536 = vsel %vm535, %v532, %v534
      %v537 = vsel %vm535, %v534, %v532
      %v538 = vld [vmem:[%s3] sm:$0xff]
      %v539 = vld [vmem:[%s4] sm:$0xff]
      %541 = vset.pattern.permute.xlu0 0
      %542 = vperm.xlu0 %541, %v539
      %v543 = vpop.permute.xlu0 %542
      %vm545 = vcmask 261120
      %v547 = vsel %vm545, %v538, 0
      %549 = vmatprep.subr.mxu0 %v514
      %550 = vmatpush1.msra.mxu0 %v513
      %551 = vmatprep.subr.mxu0 %v523
      %552 = vmatpush1.msra.mxu0 %v522
      %553 = vmatprep.subr.mxu0 %v530
      %554 = vmatpush1.msra.mxu0 %v529
      %555 = vmatprep.subr.mxu0 %v537
      %556 = vmatpush1.msra.mxu0 %v536
      %557 = vmatprep.subr.mxu0 0.0
      %558 = vmatpush1.msra.mxu0 0.0
      %559 = vmatprep.subr.mxu0 0.0
      %560 = vmatpush1.msra.mxu0 0.0
      %561 = vmatprep.subr.mxu0 0.0
      %562 = vmatpush1.msra.mxu0 0.0
      %563 = vmatprep.subr.mxu0 0.0
      %564 = vmatpush1.msra.mxu0 0.0
      %565 = vmatprep.subr.mxu0 0.0
      %566 = vmatpush1.msra.mxu0 0.0
      %567 = vmatprep.subr.mxu0 0.0
      %568 = vmatpush1.msra.mxu0 0.0
      %569 = vmatprep.subr.mxu0 0.0
      %570 = vmatpush1.msra.mxu0 0.0
      %571 = vmatprep.subr.mxu0 0.0
      %572 = vmatpush1.msra.mxu0 0.0
      %573 = vmatprep.subr.mxu0 0.0
      %574 = vmatpush1.msra.mxu0 0.0
      %575 = vmatprep.subr.mxu0 0.0
      %576 = vmatpush1.msra.mxu0 0.0
      %577 = vmatprep.subr.mxu0 0.0
      %578 = vmatpush1.msra.mxu0 0.0
      %579 = vmatprep.subr.mxu0 0.0
      %580 = vmatpush1.msra.mxu0 0.0
      %581 = vmatprep.subr.mxu0 0.0
      %582 = vmatpush1.msra.mxu0 0.0
      %583 = vmatprep.subr.mxu0 0.0
      %584 = vmatpush1.msra.mxu0 0.0
      %585 = vmatprep.subr.mxu0 0.0
      %586 = vmatpush1.msra.mxu0 0.0
      %587 = vmatprep.subr.mxu0 0.0
      %588 = vmatpush1.msra.mxu0 0.0
      %589 = vmatprep.subr.mxu0 0.0
      %590 = vmatpush1.msra.mxu0 0.0
      %591 = vmatprep.subr.mxu0 0.0
      %592 = vmatpush1.msra.mxu0 0.0
      %593 = vmatprep.subr.mxu0 0.0
      %594 = vmatpush1.msra.mxu0 0.0
      %595 = vmatprep.subr.mxu0 0.0
      %596 = vmatpush1.msra.mxu0 0.0
      %597 = vmatprep.subr.mxu0 0.0
      %598 = vmatpush1.msra.mxu0 0.0
      %599 = vmatprep.subr.mxu0 0.0
      %600 = vmatpush1.msra.mxu0 0.0
      %601 = vmatprep.subr.mxu0 0.0
      %602 = vmatpush1.msra.mxu0 0.0
      %603 = vmatprep.subr.mxu0 0.0
      %604 = vmatpush1.msra.mxu0 0.0
      %605 = vmatprep.subr.mxu0 0.0
      %606 = vmatpush1.msra.mxu0 0.0
      %607 = vmatprep.subr.mxu0 0.0
      %608 = vmatpush1.msra.mxu0 0.0
      %609 = vmatprep.subr.mxu0 0.0
      %610 = vmatpush1.msra.mxu0 0.0
      %611 = vmatprep.subr.mxu0 0.0
      %612 = vmatpush1.msra.mxu0 0.0
      %613 = vmatprep.mubr.f32.mxu0 0.0
      %614 = vmatmul.mubr.f32.gmra.mrb[0].mxu0 %v547
      %v615 = vpop.f32.mrb[0].mxu0
      %v616 = vadd.f32 %v543, %v615
      %v617 = vpop.f32.mrb[0].mxu0
      %v618 = vadd.f32 %v543, %v617
      %619 = vdwg.mxu0
      %v620 = vxor.u32 %v616, 2147483648
      %v621 = vxor.u32 %v618, 2147483648
      %v622 = vmul.f32 %v620, 1.442695
      %v623 = vpow.pop %v622
      %v624 = vmul.f32 %v621, 1.442695
      %v625 = vpow.pop %v624
      %v626 = vadd.f32 %v623, 1.0
      %v627 = vadd.f32 %v625, 1.0
      %v628 = vrcp.pop %v626
      %v629 = vmul.f32 1.0, %v628
      %v630 = vrcp.pop %v627
      %v631 = vmul.f32 1.0, %v630
      %v632 = vmul.f32 %v616, %v629
      %v633 = vmul.f32 %v618, %v631
      %v634 = vld [vmem:[%s5] sm:$0xff]
      %v635 = vld [vmem:[%s6] sm:$0xff]
      %637 = vset.pattern.permute.xlu0 0
      %638 = vperm.xlu0 %637, %v635
      %v639 = vpop.permute.xlu0 %638
      %v642 = vsel %vm426, %v634, 0
      %644 = vmatprep.subr.mxu0 %v633
      %645 = vmatpush1.msra.mxu0 %v632
      %646 = vmatprep.subr.mxu0 0.0
      %647 = vmatpush1.msra.mxu0 0.0
      %648 = vmatprep.subr.mxu0 0.0
      %649 = vmatpush1.msra.mxu0 0.0
      %650 = vmatprep.subr.mxu0 0.0
      %651 = vmatpush1.msra.mxu0 0.0
      %652 = vmatprep.subr.mxu0 0.0
      %653 = vmatpush1.msra.mxu0 0.0
      %654 = vmatprep.subr.mxu0 0.0
      %655 = vmatpush1.msra.mxu0 0.0
      %656 = vmatprep.subr.mxu0 0.0
      %657 = vmatpush1.msra.mxu0 0.0
      %658 = vmatprep.subr.mxu0 0.0
      %659 = vmatpush1.msra.mxu0 0.0
      %660 = vmatprep.subr.mxu0 0.0
      %661 = vmatpush1.msra.mxu0 0.0
      %662 = vmatprep.subr.mxu0 0.0
      %663 = vmatpush1.msra.mxu0 0.0
      %664 = vmatprep.subr.mxu0 0.0
      %665 = vmatpush1.msra.mxu0 0.0
      %666 = vmatprep.subr.mxu0 0.0
      %667 = vmatpush1.msra.mxu0 0.0
      %668 = vmatprep.subr.mxu0 0.0
      %669 = vmatpush1.msra.mxu0 0.0
      %670 = vmatprep.subr.mxu0 0.0
      %671 = vmatpush1.msra.mxu0 0.0
      %672 = vmatprep.subr.mxu0 0.0
      %673 = vmatpush1.msra.mxu0 0.0
      %674 = vmatprep.subr.mxu0 0.0
      %675 = vmatpush1.msra.mxu0 0.0
      %676 = vmatprep.subr.mxu0 0.0
      %677 = vmatpush1.msra.mxu0 0.0
      %678 = vmatprep.subr.mxu0 0.0
      %679 = vmatpush1.msra.mxu0 0.0
      %680 = vmatprep.subr.mxu0 0.0
      %681 = vmatpush1.msra.mxu0 0.0
      %682 = vmatprep.subr.mxu0 0.0
      %683 = vmatpush1.msra.mxu0 0.0
      %684 = vmatprep.subr.mxu0 0.0
      %685 = vmatpush1.msra.mxu0 0.0
      %686 = vmatprep.subr.mxu0 0.0
      %687 = vmatpush1.msra.mxu0 0.0
      %688 = vmatprep.subr.mxu0 0.0
      %689 = vmatpush1.msra.mxu0 0.0
      %690 = vmatprep.subr.mxu0 0.0
      %691 = vmatpush1.msra.mxu0 0.0
      %692 = vmatprep.subr.mxu0 0.0
      %693 = vmatpush1.msra.mxu0 0.0
      %694 = vmatprep.subr.mxu0 0.0
      %695 = vmatpush1.msra.mxu0 0.0
      %696 = vmatprep.subr.mxu0 0.0
      %697 = vmatpush1.msra.mxu0 0.0
      %698 = vmatprep.subr.mxu0 0.0
      %699 = vmatpush1.msra.mxu0 0.0
      %700 = vmatprep.subr.mxu0 0.0
      %701 = vmatpush1.msra.mxu0 0.0
      %702 = vmatprep.subr.mxu0 0.0
      %703 = vmatpush1.msra.mxu0 0.0
      %704 = vmatprep.subr.mxu0 0.0
      %705 = vmatpush1.msra.mxu0 0.0
      %706 = vmatprep.subr.mxu0 0.0
      %707 = vmatpush1.msra.mxu0 0.0
      %708 = vmatprep.mubr.f32.mxu0 0.0
      %709 = vmatmul.mubr.f32.gmra.mrb[0].mxu0 %v642
      %v710 = vpop.f32.mrb[0].mxu0
      %v711 = vadd.f32 %v639, %v710
      %v712 = vpop.f32.mrb[0].mxu0
      %v713 = vadd.f32 %v639, %v712
      %714 = vdwg.mxu0
      %vm715 = vcmp.gt.f32.partialorder %v711, 0.0
      %vm716 = vcmp.gt.f32.partialorder %v713, 0.0
      %v717 = vsel %vm715, 1, 0
      %v718 = vsel %vm716, 1, 0
      %v719 = vcvt.s32.f32 %v717
      %v720 = vcvt.s32.f32 %v718
      %vm721 = vcmp.lt.f32.partialorder %v711, 0.0
      %vm722 = vcmp.lt.f32.partialorder %v713, 0.0
      %v723 = vsel %vm721, 1, 0
      %v724 = vsel %vm722, 1, 0
      %v725 = vcvt.s32.f32 %v723
      %v726 = vcvt.s32.f32 %v724
      %v727 = vsub.f32 %v719, %v725
      %v728 = vsub.f32 %v720, %v726
      %v729 = vld [vmem:[%s11] sm:$0x3]
      %v731 = vlaneseq
      %v732 = vshrl.u32 %v731, 7
      %v733 = vsub.s32 0, %v732
      %v734 = vrot.slane %v729, %v733
      %v735 = vlaneseq
      %v736 = vshrl.u32 %v735, 7
      %v737 = vsub.s32 1, %v736
      %v738 = vrot.slane %v729, %v737
      %v741 = vmul.f32 %v727, %v734
      %v742 = vmul.f32 %v728, %v738
      %743 = vrot.lane.b32.xlu0 %v741, 1
      %v744 = vpop.permute.xlu0 %743
      %745 = vrot.lane.b32.xlu0 %v742, 1
      %v746 = vpop.permute.xlu0 %745
      %vm747 = vcmp.lt.s32.totalorder %v520, 1
      %v748 = vsel %vm747, %v744, %v746
      %v749 = vsel %vm747, %v746, %v744
      %750 = vrot.lane.b32.xlu0 %v741, 16
      %v751 = vpop.permute.xlu0 %750
      %752 = vrot.lane.b32.xlu0 %v742, 16
      %v753 = vpop.permute.xlu0 %752
      %vm754 = vcmp.lt.s32.totalorder %v520, 16
      %v755 = vsel %vm754, %v751, %v753
      %v756 = vsel %vm754, %v753, %v751
      %757 = vrot.lane.b32.xlu0 %v741, 17
      %v758 = vpop.permute.xlu0 %757
      %759 = vrot.lane.b32.xlu0 %v742, 17
      %v760 = vpop.permute.xlu0 %759
      %vm761 = vcmp.lt.s32.totalorder %v520, 17
      %v762 = vsel %vm761, %v758, %v760
      %v763 = vsel %vm761, %v760, %v758
      %v764 = vld [vmem:[%s7] sm:$0xff]
      %v765 = vld [vmem:[%s8] sm:$0xff]
      %767 = vset.pattern.permute.xlu0 0
      %768 = vperm.xlu0 %767, %v765
      %v769 = vpop.permute.xlu0 %768
      %v772 = vsel %vm545, %v764, 0
      %774 = vmatprep.subr.mxu0 %v742
      %775 = vmatpush1.msra.mxu0 %v741
      %776 = vmatprep.subr.mxu0 %v748
      %777 = vmatpush1.msra.mxu0 %v749
      %778 = vmatprep.subr.mxu0 %v755
      %779 = vmatpush1.msra.mxu0 %v756
      %780 = vmatprep.subr.mxu0 %v762
      %781 = vmatpush1.msra.mxu0 %v763
      %782 = vmatprep.subr.mxu0 0.0
      %783 = vmatpush1.msra.mxu0 0.0
      %784 = vmatprep.subr.mxu0 0.0
      %785 = vmatpush1.msra.mxu0 0.0
      %786 = vmatprep.subr.mxu0 0.0
      %787 = vmatpush1.msra.mxu0 0.0
      %788 = vmatprep.subr.mxu0 0.0
      %789 = vmatpush1.msra.mxu0 0.0
      %790 = vmatprep.subr.mxu0 0.0
      %791 = vmatpush1.msra.mxu0 0.0
      %792 = vmatprep.subr.mxu0 0.0
      %793 = vmatpush1.msra.mxu0 0.0
      %794 = vmatprep.subr.mxu0 0.0
      %795 = vmatpush1.msra.mxu0 0.0
      %796 = vmatprep.subr.mxu0 0.0
      %797 = vmatpush1.msra.mxu0 0.0
      %798 = vmatprep.subr.mxu0 0.0
      %799 = vmatpush1.msra.mxu0 0.0
      %800 = vmatprep.subr.mxu0 0.0
      %801 = vmatpush1.msra.mxu0 0.0
      %802 = vmatprep.subr.mxu0 0.0
      %803 = vmatpush1.msra.mxu0 0.0
      %804 = vmatprep.subr.mxu0 0.0
      %805 = vmatpush1.msra.mxu0 0.0
      %806 = vmatprep.subr.mxu0 0.0
      %807 = vmatpush1.msra.mxu0 0.0
      %808 = vmatprep.subr.mxu0 0.0
      %809 = vmatpush1.msra.mxu0 0.0
      %810 = vmatprep.subr.mxu0 0.0
      %811 = vmatpush1.msra.mxu0 0.0
      %812 = vmatprep.subr.mxu0 0.0
      %813 = vmatpush1.msra.mxu0 0.0
      %814 = vmatprep.subr.mxu0 0.0
      %815 = vmatpush1.msra.mxu0 0.0
      %816 = vmatprep.subr.mxu0 0.0
      %817 = vmatpush1.msra.mxu0 0.0
      %818 = vmatprep.subr.mxu0 0.0
      %819 = vmatpush1.msra.mxu0 0.0
      %820 = vmatprep.subr.mxu0 0.0
      %821 = vmatpush1.msra.mxu0 0.0
      %822 = vmatprep.subr.mxu0 0.0
      %823 = vmatpush1.msra.mxu0 0.0
      %824 = vmatprep.subr.mxu0 0.0
      %825 = vmatpush1.msra.mxu0 0.0
      %826 = vmatprep.subr.mxu0 0.0
      %827 = vmatpush1.msra.mxu0 0.0
      %828 = vmatprep.subr.mxu0 0.0
      %829 = vmatpush1.msra.mxu0 0.0
      %830 = vmatprep.subr.mxu0 0.0
      %831 = vmatpush1.msra.mxu0 0.0
      %832 = vmatprep.subr.mxu0 0.0
      %833 = vmatpush1.msra.mxu0 0.0
      %834 = vmatprep.subr.mxu0 0.0
      %835 = vmatpush1.msra.mxu0 0.0
      %836 = vmatprep.subr.mxu0 0.0
      %837 = vmatpush1.msra.mxu0 0.0
      %838 = vmatprep.mubr.f32.mxu0 0.0
      %839 = vmatmul.mubr.f32.gmra.mrb[0].mxu0 %v772
      %v840 = vpop.f32.mrb[0].mxu0
      %v841 = vadd.f32 %v769, %v840
      %v842 = vpop.f32.mrb[0].mxu0
      %v843 = vadd.f32 %v769, %v842
      %844 = vdwg.mxu0
      %v845 = vxor.u32 %v841, 2147483648
      %v846 = vxor.u32 %v843, 2147483648
      %v847 = vmul.f32 %v845, 1.442695
      %v848 = vpow.pop %v847
      %v849 = vmul.f32 %v846, 1.442695
      %v850 = vpow.pop %v849
      %v851 = vadd.f32 %v848, 1.0
      %v852 = vadd.f32 %v850, 1.0
      %v853 = vrcp.pop %v851
      %v854 = vmul.f32 1.0, %v853
      %v855 = vrcp.pop %v852
      %v856 = vmul.f32 1.0, %v855
      %v857 = vmul.f32 %v841, %v854
      %v858 = vmul.f32 %v843, %v856
      %v859 = vld [vmem:[%s9] sm:$0xff]
      %v860 = vld [vmem:[%s10] sm:$0xff]
      %862 = vset.pattern.permute.xlu0 0
      %863 = vperm.xlu0 %862, %v860
      %v864 = vpop.permute.xlu0 %863
      %v867 = vsel %vm426, %v859, 0
      %869 = vmatprep.subr.mxu0 %v858
      %870 = vmatpush1.msra.mxu0 %v857
      %871 = vmatprep.subr.mxu0 0.0
      %872 = vmatpush1.msra.mxu0 0.0
      %873 = vmatprep.subr.mxu0 0.0
      %874 = vmatpush1.msra.mxu0 0.0
      %875 = vmatprep.subr.mxu0 0.0
      %876 = vmatpush1.msra.mxu0 0.0
      %877 = vmatprep.subr.mxu0 0.0
      %878 = vmatpush1.msra.mxu0 0.0
      %879 = vmatprep.subr.mxu0 0.0
      %880 = vmatpush1.msra.mxu0 0.0
      %881 = vmatprep.subr.mxu0 0.0
      %882 = vmatpush1.msra.mxu0 0.0
      %883 = vmatprep.subr.mxu0 0.0
      %884 = vmatpush1.msra.mxu0 0.0
      %885 = vmatprep.subr.mxu0 0.0
      %886 = vmatpush1.msra.mxu0 0.0
      %887 = vmatprep.subr.mxu0 0.0
      %888 = vmatpush1.msra.mxu0 0.0
      %889 = vmatprep.subr.mxu0 0.0
      %890 = vmatpush1.msra.mxu0 0.0
      %891 = vmatprep.subr.mxu0 0.0
      %892 = vmatpush1.msra.mxu0 0.0
      %893 = vmatprep.subr.mxu0 0.0
      %894 = vmatpush1.msra.mxu0 0.0
      %895 = vmatprep.subr.mxu0 0.0
      %896 = vmatpush1.msra.mxu0 0.0
      %897 = vmatprep.subr.mxu0 0.0
      %898 = vmatpush1.msra.mxu0 0.0
      %899 = vmatprep.subr.mxu0 0.0
      %900 = vmatpush1.msra.mxu0 0.0
      %901 = vmatprep.subr.mxu0 0.0
      %902 = vmatpush1.msra.mxu0 0.0
      %903 = vmatprep.subr.mxu0 0.0
      %904 = vmatpush1.msra.mxu0 0.0
      %905 = vmatprep.subr.mxu0 0.0
      %906 = vmatpush1.msra.mxu0 0.0
      %907 = vmatprep.subr.mxu0 0.0
      %908 = vmatpush1.msra.mxu0 0.0
      %909 = vmatprep.subr.mxu0 0.0
      %910 = vmatpush1.msra.mxu0 0.0
      %911 = vmatprep.subr.mxu0 0.0
      %912 = vmatpush1.msra.mxu0 0.0
      %913 = vmatprep.subr.mxu0 0.0
      %914 = vmatpush1.msra.mxu0 0.0
      %915 = vmatprep.subr.mxu0 0.0
      %916 = vmatpush1.msra.mxu0 0.0
      %917 = vmatprep.subr.mxu0 0.0
      %918 = vmatpush1.msra.mxu0 0.0
      %919 = vmatprep.subr.mxu0 0.0
      %920 = vmatpush1.msra.mxu0 0.0
      %921 = vmatprep.subr.mxu0 0.0
      %922 = vmatpush1.msra.mxu0 0.0
      %923 = vmatprep.subr.mxu0 0.0
      %924 = vmatpush1.msra.mxu0 0.0
      %925 = vmatprep.subr.mxu0 0.0
      %926 = vmatpush1.msra.mxu0 0.0
      %927 = vmatprep.subr.mxu0 0.0
      %928 = vmatpush1.msra.mxu0 0.0
      %929 = vmatprep.subr.mxu0 0.0
      %930 = vmatpush1.msra.mxu0 0.0
      %931 = vmatprep.subr.mxu0 0.0
      %932 = vmatpush1.msra.mxu0 0.0
      %933 = vmatprep.mubr.f32.mxu0 0.0
      %934 = vmatmul.mubr.f32.gmra.mrb[0].mxu0 %v867
      %v935 = vpop.f32.mrb[0].mxu0
      %v936 = vadd.f32 %v864, %v935
      %v937 = vpop.f32.mrb[0].mxu0
      %v938 = vadd.f32 %v864, %v937
      %939 = vdwg.mxu0
      %v940 = vxor.u32 %v936, 2147483648
      %v941 = vxor.u32 %v938, 2147483648
      %v942 = vmul.f32 %v940, 1.442695
      %v943 = vpow.pop %v942
      %v944 = vmul.f32 %v941, 1.442695
      %v945 = vpow.pop %v944
      %v946 = vadd.f32 %v943, 1.0
      %v947 = vadd.f32 %v945, 1.0
      %v948 = vrcp.pop %v946
      %v949 = vmul.f32 1.0, %v948
      %v950 = vrcp.pop %v947
      %v951 = vmul.f32 1.0, %v950
      %v952 = vmul.f32 %v936, %v949
      %v953 = vmul.f32 %v938, %v951
      %954 = vst [vmem:[%s415] sm:$0xff] %v952
      %955 = vst [vmem:[%s415 + $0x8] sm:$0xff] %v953
      %s956 = smul.u32 2, %s23
      %p957 = scmp.lt.s32.totalorder %s956, 3
      %s958 = scalar_select %p957, %s956, 3
      %s959 = smul.addr %s958, 8
      %s960 = scalar_lea.vmem %s12, %s959
      // Predicated region
      $region69: #{vae_forward.1} parent=67 // pred_check
        %p961 = pneg %p298
      $region70: #{vae_forward.1} parent=67 // pred_check_branch
        %963 = sbr.rel (%p961) target = $region72
      $region71: #{vae_forward.1} parent=67 // pred_region
        %s964 = smul.u32 2, %s23
      $region72: #{vae_forward.1} parent=67 // pred_fallthru
        _
    $region68: #{vae_forward.1} parent=5 // pred_fallthru
      _
    %p965 = scmp.le.s32.totalorder 2, %s18
    // Predicated region
    $region73: #{vae_forward.1} parent=5 // pred_check
      %p966 = pneg %p965
    $region74: #{vae_forward.1} parent=5 // pred_check_branch
      %968 = sbr.rel (%p966) target = $region76
    $region75: #{vae_forward.1} parent=5 // pred_region
      %s969 = ssub.s32 %s18, 2
      // Predicated region
      $region77: #{vae_forward.1} parent=75 // pred_check
        %p970 = pneg %p304
      $region78: #{vae_forward.1} parent=75 // pred_check_branch
        %972 = sbr.rel (%p970) target = $region80
      $region79: #{vae_forward.1} parent=75 // pred_region
        %s973 = smul.u32 2, %s24
        %p974 = scmp.lt.s32.totalorder %s973, 3
        %s975 = scalar_select %p974, %s973, 3
        %s976 = smul.addr %s975, 8
        %s977 = scalar_lea.vmem %s12, %s976
      $region80: #{vae_forward.1} parent=75 // pred_fallthru
        _
    $region76: #{vae_forward.1} parent=5 // pred_fallthru
      _
  $region6: #{vae_forward.1} parent=0 // loop_footer
    %s22 = sadd.s32 1, %s18
  $region7: #{vae_forward.1} parent=0 // loop_footer_branch
    %17 = sbr.rel target = $region3
  $region8: #{vae_forward.1} parent=0 // loop_exit
    _

</llo_original>
